<compile_context>
chip_gen: v5e
topology: v5e:2x2
jax: 0.10.0
libtpu: 0.0.40
codegen_flags: <defaults>
</compile_context>

<pallas_src>
import functools

import jax
import jax.numpy as jnp
from jax.experimental import pallas as pl
from jax.experimental.pallas import tpu as pltpu

_NEG_INF = -1e9


def _round_up(x, m):
    return ((x + m - 1) // m) * m


def _score_label_kernel(logits_ref, scores_ref, labels_ref, *, class_counts):
    """One grid step = one Q-tile, all heads.

    logits_ref: (n_heads, bs, C_pad, tq)  model dtype; C on sublanes, Q on lanes
    scores_ref: (bs, tq) f32              mean-over-heads sigmoid(max) score
    labels_ref: (n_heads, bs, tq) i32     per-head argmax class index
    """
    n_heads = len(class_counts)
    c_pad = logits_ref.shape[2]
    inv_heads = jnp.float32(1.0 / n_heads)      # multiply, not divide

    score_sum = None
    for h, n_cls in enumerate(class_counts):    # static unrolled loop, heads small
        x = logits_ref[h].astype(jnp.float32)                    # (bs, C_pad, tq)
        col = jax.lax.broadcasted_iota(jnp.int32, x.shape, dimension=1)
        valid = col < n_cls                                      # mask padded class rows
        xm = jnp.where(valid, x, _NEG_INF)
        mx = jnp.max(xm, axis=1)                                 # sublane reduce -> (bs, tq)

        # sigmoid is monotonic => sigmoid(max(x)) == max(sigmoid(x)); only bs*tq
        # transcendentals on the EUP instead of bs*tq*C_pad.
        head_score = jax.nn.sigmoid(mx)

        # First-occurrence argmax over the valid class rows (matches torch.argmax).
        eq = valid & (x == mx[:, None, :])
        lab = jnp.min(jnp.where(eq, col, c_pad), axis=1).astype(jnp.int32)

        score_sum = head_score if score_sum is None else score_sum + head_score
        labels_ref[h, :, :] = lab

    scores_ref[...] = score_sum * inv_heads


def _compute_scores_labels(logits_t, class_counts, q_tile):
    """logits_t: (n_heads, bs, C_pad, Q_pad) in model dtype."""
    n_heads, bs, c_pad, q_pad = logits_t.shape
    scores, labels = pl.pallas_call(
        functools.partial(_score_label_kernel, class_counts=class_counts),
        out_shape=(
            jax.ShapeDtypeStruct((bs, q_pad), jnp.float32),
            jax.ShapeDtypeStruct((n_heads, bs, q_pad), jnp.int32),
        ),
        grid_spec=pltpu.PrefetchScalarGridSpec(
            num_scalar_prefetch=0,
            grid=(q_pad // q_tile,),
            in_specs=[
                pl.BlockSpec((n_heads, bs, c_pad, q_tile),
                             lambda i: (0, 0, 0, i)),
            ],
            out_specs=[
                pl.BlockSpec((bs, q_tile), lambda i: (0, i)),
                pl.BlockSpec((n_heads, bs, q_tile), lambda i: (0, 0, i)),
            ],
        ),
        compiler_params=pltpu.CompilerParams(
            # Q-tile axis is independent work: megacore-shardable on v7x and
            # gives the software pipeline real depth.  Blocks are tiny
            # (n_heads*bs*8*q_tile elems), well inside every chip's scoped VMEM.
            dimension_semantics=("parallel",),
        ),
    )(logits_t)
    return scores, labels


def _pack_logits(outputs, num_classes):
    """Stack heads into (n_heads, bs, C_pad8, Q_pad128) keeping the model dtype."""
    names = sorted(num_classes.keys())
    counts = tuple(int(num_classes[n]) for n in names)
    sample = outputs[f"pred_{names[0]}"]
    q = sample.shape[1]
    c_pad = _round_up(max(counts), 8)                   # classes -> sublanes (x8, not x128)
    q_tile = min(512, _round_up(q, 128))                # lanes; biggest aligned tile
    q_pad = _round_up(q, q_tile)
    stacked = []
    for name, c in zip(names, counts):
        lg = outputs[f"pred_{name}"]                    # (bs, Q, C_i) model dtype (no f32 upcast)
        lg = jnp.swapaxes(lg, 1, 2)                     # (bs, C_i, Q): C->sublanes, Q->lanes
        lg = jnp.pad(lg, ((0, 0), (0, c_pad - c), (0, q_pad - q)))  # pad value masked in-kernel
        stacked.append(lg)
    return jnp.stack(stacked, axis=0), counts, q_tile, q


def litr_postprocess(outputs, num_classes, num_queries, top_k=100, score_thresh=0.5):
    """JAX/Pallas equivalent of LiTrPostProcessor.forward (deploy_mode=False)."""
    if top_k > num_queries:
        top_k = num_queries

    boxes = outputs["pred_boxes"].astype(jnp.float32)   # (bs, Q, 4)
    bs = boxes.shape[0]

    logits_t, counts, q_tile, q = _pack_logits(outputs, num_classes)

    # --- Pallas hot path: per-head masked max/argmax + sigmoid + mean over heads ---
    scores_p, labels_p = _compute_scores_labels(logits_t, counts, q_tile)
    scores = scores_p[:, :q]                            # (bs, Q)
    labels = labels_p[:, :, :q]                         # (n_heads, bs, Q)

    # --- Glue: top_k selection, gathers, thresholding ---
    topk_scores, topk_indices = jax.lax.top_k(scores, top_k)            # (bs, top_k)
    topk_boxes = jnp.take_along_axis(boxes, topk_indices[..., None], axis=1)
    labels_bqh = jnp.transpose(labels, (1, 2, 0))                       # (bs, Q, n_heads)
    topk_labels = jnp.take_along_axis(labels_bqh, topk_indices[..., None], axis=1)
    topk_scores = topk_scores[..., None]                                # (bs, top_k, 1)
    valid_mask = topk_scores[..., 0] >= score_thresh                    # (bs, top_k)

    # TODO(synk): PyTorch returns ragged per-batch tensors filtered by valid_mask;
    # JAX needs static shapes, so we return full top_k results plus the boolean mask.
    results = []
    for b in range(bs):
        results.append({
            "boxes": topk_boxes[b],
            "scores": topk_scores[b],
            "labels": topk_labels[b],
            "valid_mask": valid_mask[b],
        })
    return results


def _reference_scores_labels(outputs, num_classes):
    """Pure-JAX reference for the kernel portion (for a correctness check)."""
    names = sorted(num_classes.keys())
    head_scores, head_labels = [], []
    for name in names:
        lg = outputs[f"pred_{name}"].astype(jnp.float32)
        head_scores.append(jnp.max(jax.nn.sigmoid(lg), axis=-1))
        head_labels.append(jnp.argmax(lg, axis=-1).astype(jnp.int32))
    scores = jnp.mean(jnp.stack(head_scores, axis=-1), axis=-1)          # (bs, Q)
    labels = jnp.stack(head_labels, axis=0)                              # (n_heads, bs, Q)
    return scores, labels


if __name__ == "__main__":
    bs = 2
    num_queries = 16
    num_classes = {"car": 4, "pedestrian": 3}
    top_k = 8
    score_thresh = 0.5

    key = jax.random.PRNGKey(0)
    k_box, k_car, k_ped = jax.random.split(key, 3)
    # Logits in bf16 (model output dtype); kernel casts to f32 internally.
    outputs = {
        "pred_boxes": jax.random.uniform(k_box, (bs, num_queries, 4), jnp.float32),
        "pred_car": jax.random.normal(
            k_car, (bs, num_queries, num_classes["car"]), jnp.float32
        ).astype(jnp.bfloat16),
        "pred_pedestrian": jax.random.normal(
            k_ped, (bs, num_queries, num_classes["pedestrian"]), jnp.float32
        ).astype(jnp.bfloat16),
    }

    results = litr_postprocess(outputs, num_classes, num_queries,
                               top_k=top_k, score_thresh=score_thresh)
    for r in results:
        jax.block_until_ready(r["boxes"])
        jax.block_until_ready(r["scores"])
        jax.block_until_ready(r["labels"])
        jax.block_until_ready(r["valid_mask"])

    # Sanity check of the kernel against a pure-JAX reference.
    logits_t, counts, q_tile, q = _pack_logits(outputs, num_classes)
    k_scores_p, k_labels_p = _compute_scores_labels(logits_t, counts, q_tile)
    k_scores = k_scores_p[:, :q]
    k_labels = k_labels_p[:, :, :q]
    r_scores, r_labels = _reference_scores_labels(outputs, num_classes)
    assert jnp.allclose(k_scores, r_scores, atol=1e-5), "score mismatch"
    assert jnp.array_equal(k_labels, r_labels), "label mismatch"

    print("KERNEL_OK")
</pallas_src>

<mosaic_0001>
module attributes {stable_mosaic.version = 11 : i64} {
  func.func @_score_label_kernel(%arg0: i32, %arg1: memref<2x2x8x128xbf16, #tpu.memory_space<vmem>>, %arg2: memref<2x128xf32, #tpu.memory_space<vmem>>, %arg3: memref<2x2x128xi32, #tpu.memory_space<vmem>>) attributes {dimension_semantics = [#tpu.dimension_semantics<parallel>], iteration_bounds = array<i64: 1>, scalar_prefetch = 0 : i64, scratch_operands = 0 : i64, tpu.core_type = #tpu.core_type<tc>, window_params = [{transform_indices = @transform_0, window_bounds = array<i64: 2, 2, 8, 128>}, {transform_indices = @transform_1, window_bounds = array<i64: 2, 128>}, {transform_indices = @transform_2, window_bounds = array<i64: 2, 2, 128>}]} {
    %c0 = arith.constant 0 : index
    %c0_0 = arith.constant 0 : index
    %c0_1 = arith.constant 0 : index
    %c0_2 = arith.constant 0 : index
    %0 = vector.load %arg1[%c0, %c0_0, %c0_1, %c0_2] : memref<2x2x8x128xbf16, #tpu.memory_space<vmem>>, vector<1x2x8x128xbf16>
    %1 = vector.shape_cast %0 : vector<1x2x8x128xbf16> to vector<2x8x128xbf16>
    %2 = arith.extf %1 : vector<2x8x128xbf16> to vector<2x8x128xf32>
    %3 = tpu.iota {dimensions = array<i32: 1>} : vector<2x8x128xi32>
    %c4_i32 = arith.constant 4 : i32
    %4 = vector.broadcast %c4_i32 : i32 to vector<2x8x128xi32>
    %5 = arith.cmpi slt, %3, %4 : vector<2x8x128xi32>
    %cst = arith.constant -1.000000e+09 : f32
    %6 = vector.broadcast %cst : f32 to vector<2x8x128xf32>
    %7 = arith.select %5, %2, %6 : vector<2x8x128xi1>, vector<2x8x128xf32>
    %cst_3 = arith.constant dense<0xFF800000> : vector<2x128xf32>
    %8 = vector.multi_reduction <maximumf>, %7, %cst_3 [1] : vector<2x8x128xf32> to vector<2x128xf32>
    %9 = arith.negf %8 : vector<2x128xf32>
    %10 = math.exp %9 : vector<2x128xf32>
    %cst_4 = arith.constant 1.000000e+00 : f32
    %11 = vector.broadcast %cst_4 : f32 to vector<2x128xf32>
    %12 = arith.addf %11, %10 : vector<2x128xf32>
    %13 = arith.divf %11, %12 : vector<2x128xf32>
    %14 = vector.shape_cast %8 : vector<2x128xf32> to vector<2x1x128xf32>
    %15 = vector.broadcast %14 : vector<2x1x128xf32> to vector<2x8x128xf32>
    %16 = arith.cmpf oeq, %2, %15 : vector<2x8x128xf32>
    %17 = arith.andi %5, %16 : vector<2x8x128xi1>
    %c8_i32 = arith.constant 8 : i32
    %18 = vector.broadcast %c8_i32 : i32 to vector<2x8x128xi32>
    %19 = arith.select %17, %3, %18 : vector<2x8x128xi1>, vector<2x8x128xi32>
    %cst_5 = arith.constant dense<2147483647> : vector<2x128xi32>
    %20 = vector.multi_reduction <minsi>, %19, %cst_5 [1] : vector<2x8x128xi32> to vector<2x128xi32>
    %c0_6 = arith.constant 0 : index
    %c0_7 = arith.constant 0 : index
    %c0_8 = arith.constant 0 : index
    %21 = vector.load %arg3[%c0_6, %c0_7, %c0_8] : memref<2x2x128xi32, #tpu.memory_space<vmem>>, vector<1x2x128xi32>
    %22 = vector.shape_cast %21 : vector<1x2x128xi32> to vector<2x128xi32>
    %23 = vector.shape_cast %20 : vector<2x128xi32> to vector<1x2x128xi32>
    tpu.vector_store %arg3[%c0_6, %c0_7, %c0_8], %23 {strides = array<i32>} : memref<2x2x128xi32, #tpu.memory_space<vmem>>, vector<1x2x128xi32>,
    %c1 = arith.constant 1 : index
    %c0_9 = arith.constant 0 : index
    %c0_10 = arith.constant 0 : index
    %c0_11 = arith.constant 0 : index
    %24 = vector.load %arg1[%c1, %c0_9, %c0_10, %c0_11] : memref<2x2x8x128xbf16, #tpu.memory_space<vmem>>, vector<1x2x8x128xbf16>
    %25 = vector.shape_cast %24 : vector<1x2x8x128xbf16> to vector<2x8x128xbf16>
    %26 = arith.extf %25 : vector<2x8x128xbf16> to vector<2x8x128xf32>
    %27 = tpu.iota {dimensions = array<i32: 1>} : vector<2x8x128xi32>
    %c3_i32 = arith.constant 3 : i32
    %28 = vector.broadcast %c3_i32 : i32 to vector<2x8x128xi32>
    %29 = arith.cmpi slt, %27, %28 : vector<2x8x128xi32>
    %cst_12 = arith.constant -1.000000e+09 : f32
    %30 = vector.broadcast %cst_12 : f32 to vector<2x8x128xf32>
    %31 = arith.select %29, %26, %30 : vector<2x8x128xi1>, vector<2x8x128xf32>
    %cst_13 = arith.constant dense<0xFF800000> : vector<2x128xf32>
    %32 = vector.multi_reduction <maximumf>, %31, %cst_13 [1] : vector<2x8x128xf32> to vector<2x128xf32>
    %33 = arith.negf %32 : vector<2x128xf32>
    %34 = math.exp %33 : vector<2x128xf32>
    %cst_14 = arith.constant 1.000000e+00 : f32
    %35 = vector.broadcast %cst_14 : f32 to vector<2x128xf32>
    %36 = arith.addf %35, %34 : vector<2x128xf32>
    %37 = arith.divf %35, %36 : vector<2x128xf32>
    %38 = vector.shape_cast %32 : vector<2x128xf32> to vector<2x1x128xf32>
    %39 = vector.broadcast %38 : vector<2x1x128xf32> to vector<2x8x128xf32>
    %40 = arith.cmpf oeq, %26, %39 : vector<2x8x128xf32>
    %41 = arith.andi %29, %40 : vector<2x8x128xi1>
    %c8_i32_15 = arith.constant 8 : i32
    %42 = vector.broadcast %c8_i32_15 : i32 to vector<2x8x128xi32>
    %43 = arith.select %41, %27, %42 : vector<2x8x128xi1>, vector<2x8x128xi32>
    %cst_16 = arith.constant dense<2147483647> : vector<2x128xi32>
    %44 = vector.multi_reduction <minsi>, %43, %cst_16 [1] : vector<2x8x128xi32> to vector<2x128xi32>
    %45 = arith.addf %13, %37 : vector<2x128xf32>
    %c1_17 = arith.constant 1 : index
    %c0_18 = arith.constant 0 : index
    %c0_19 = arith.constant 0 : index
    %46 = vector.load %arg3[%c1_17, %c0_18, %c0_19] : memref<2x2x128xi32, #tpu.memory_space<vmem>>, vector<1x2x128xi32>
    %47 = vector.shape_cast %46 : vector<1x2x128xi32> to vector<2x128xi32>
    %48 = vector.shape_cast %44 : vector<2x128xi32> to vector<1x2x128xi32>
    tpu.vector_store %arg3[%c1_17, %c0_18, %c0_19], %48 {strides = array<i32>} : memref<2x2x128xi32, #tpu.memory_space<vmem>>, vector<1x2x128xi32>,
    %cst_20 = arith.constant 5.000000e-01 : f32
    %49 = vector.broadcast %cst_20 : f32 to vector<2x128xf32>
    %50 = arith.mulf %45, %49 : vector<2x128xf32>
    %c0_21 = arith.constant 0 : index
    %c0_22 = arith.constant 0 : index
    %51 = vector.load %arg2[%c0_21, %c0_22] : memref<2x128xf32, #tpu.memory_space<vmem>>, vector<2x128xf32>
    tpu.vector_store %arg2[%c0_21, %c0_22], %50 {strides = array<i32>} : memref<2x128xf32, #tpu.memory_space<vmem>>, vector<2x128xf32>,
    return
  }
  func.func @transform_0(%arg0: i32) -> (i32, i32, i32, i32) {
    %c0_i32 = arith.constant 0 : i32
    %c0_i32_0 = arith.constant 0 : i32
    %c0_i32_1 = arith.constant 0 : i32
    %c0_i32_2 = arith.constant 0 : i32
    return %c0_i32, %c0_i32_0, %c0_i32_1, %arg0 : i32, i32, i32, i32
  }
  func.func @transform_1(%arg0: i32) -> (i32, i32) {
    %c0_i32 = arith.constant 0 : i32
    %c0_i32_0 = arith.constant 0 : i32
    return %c0_i32, %arg0 : i32, i32
  }
  func.func @transform_2(%arg0: i32) -> (i32, i32, i32) {
    %c0_i32 = arith.constant 0 : i32
    %c0_i32_0 = arith.constant 0 : i32
    %c0_i32_1 = arith.constant 0 : i32
    return %c0_i32, %c0_i32_0, %arg0 : i32, i32, i32
  }
}

</mosaic_0001>

<llo_original>
// kernel: tpu_custom_call.1
$region0: #{tpu_custom_call.1}
  #allocation0 [shape = 'u32[]', space=smem, size = 0x4, offset = 0x4, fixed_abs, tag = 'smem constant byte address 0x4 - core index']
  #allocation1 [shape = 'u32[72,128]{1,0:T(1,128)}', space=vmem, size = 0x9000, scoped, tag = 'internal scratch']
  %s0 = inlined_call_operand.hbm [shape: bf16[2,2,8,128], index: 0, kind: input, shape index: {}]
  %s1 = inlined_call_operand.hbm [shape: f32[2,128], index: 1, kind: output, shape index: {0}]
  %s2 = inlined_call_operand.hbm [shape: s32[2,2,128], index: 2, kind: output, shape index: {1}]
  %3 = xla_tuple %s1, %s2
  %s4 = sld [smem:[#allocation0]]
  $region26: #{tpu_custom_call.1} parent=0
    _
  %s6 = ssub.s32 1, %s4
  %s7 = scalar_select 0, %s6, %s4
  $region1: #{tpu_custom_call.1} parent=0
    #allocation2 [shape = 'u8[8192]{0}', space=vmem, size = 0x2000, scoped, tag = 'input window, operand 0, single buffered']
    #allocation3 [shape = 's32[1]{0}', space=sflag, size = 0x4, scoped, tag = 'scoped memory for tpu_custom_call.1']
    #allocation4 [shape = 's32[1]{0}', space=sflag, size = 0x4, scoped, tag = 'scoped memory for tpu_custom_call.1']
    #allocation5 [shape = 'u8[1024]{0}', space=vmem, size = 0x400, scoped, tag = 'output window, operand 0, single buffered']
    #allocation6 [shape = 'u8[2048]{0}', space=vmem, size = 0x800, scoped, tag = 'output window, operand 1, single buffered']
    #allocation7 [shape = 's32[1]{0}', space=sflag, size = 0x4, scoped, tag = 'scoped memory for tpu_custom_call.1']
    %8 = vsyncpa [#allocation3], 0
    %9 = vsyncpa [#allocation4], 0
    %10 = vsyncpa [#allocation7], 0
    // Predicated region
    $region2: #{tpu_custom_call.1} parent=1 // pred_check
      _
    $region3: #{tpu_custom_call.1} parent=1 // pred_check_branch
      %12 = sbr.rel (0) target = $region5
    $region4: #{tpu_custom_call.1} parent=1 // pred_region
      %14 = vsyncadd [#allocation3], 0
      %s15 = sshll.u32 %s0, 4
      %s16 = int_to_ptr.hbm [resolvable:$true] %s15
      %s17 = sshll.u32 [#allocation2], 4
      %s18 = int_to_ptr.vmem [resolvable:$true] %s17
      %23 = dma.hbm_to_vmem [thread:$0]  %s16, 256, %s18, [#allocation3], 64, 64, 4
    $region5: #{tpu_custom_call.1} parent=1 // pred_fallthru
      _
    // Predicated region
    $region6: #{tpu_custom_call.1} parent=1 // pred_check
      _
    $region7: #{tpu_custom_call.1} parent=1 // pred_check_branch
      %25 = sbr.rel (0) target = $region9
    $region8: #{tpu_custom_call.1} parent=1 // pred_region
      %27 = dma.done [#allocation3], 256
    $region9: #{tpu_custom_call.1} parent=1 // pred_fallthru
      _
    %v28 = vld [vmem:[#allocation2] sm:$0xf]
    %v29 = vld [vmem:[#allocation2 + $0x4] sm:$0xf]
    %v30 = vunpack.c.l.bf16 %v28
    %v31 = vunpack.c.l.bf16 %v29
    %v32 = vlaneseq
    %v33 = vshrl.u32 %v32, 7
    %vm34 = vcmp.lt.s32.totalorder %v33, 4
    %v35 = vsel %vm34, %v30, -1e+09
    %v36 = vsel %vm34, %v31, -1e+09
    %v37 = vrot.slane %v35, 4
    %v38 = vmax.f32 %v35, %v37
    %v39 = vrot.slane %v38, 2
    %v40 = vmax.f32 %v38, %v39
    %v41 = vrot.slane %v40, 1
    %v42 = vmax.f32 %v40, %v41
    %v43 = vrot.slane %v36, 4
    %v44 = vmax.f32 %v36, %v43
    %v45 = vrot.slane %v44, 2
    %v46 = vmax.f32 %v44, %v45
    %v47 = vrot.slane %v46, 1
    %v48 = vmax.f32 %v46, %v47
    %v49 = vxor.u32 %v42, 2147483648
    %v50 = vxor.u32 %v48, 2147483648
    %v51 = vmul.f32 %v49, 1.442695
    %v52 = vpow.pop %v51
    %v53 = vmul.f32 %v50, 1.442695
    %v54 = vpow.pop %v53
    %v55 = vadd.f32 %v52, 1.0
    %v56 = vadd.f32 %v54, 1.0
    %v57 = vrcp.pop %v55
    %v58 = vmul.f32 %v55, %v57
    %v59 = vsub.f32 1.0, %v58
    %v60 = vmul.f32 %v57, %v59
    %v61 = vadd.f32 %v57, %v60
    %vm62 = vweird.f32 %v55
    %vm63 = vweird.f32 %v57
    %vm64 = vmor %vm62, %vm63
    %v65 = vsel %vm64, %v57, %v61
    %v66 = vand.u32 2147483647, %v55
    %vm67 = vcmp.eq.f32.partialorder %v66, 8.507059e+37
    %v68 = vand.u32 %v55, 2147483648
    %v69 = vor.u32 1.1754944e-38, %v68
    %v70 = vsel %vm67, %v69, %v65
    %v71 = vmul.f32 1.0, %v70
    %v72 = vrcp.pop %v56
    %v73 = vmul.f32 %v56, %v72
    %v74 = vsub.f32 1.0, %v73
    %v75 = vmul.f32 %v72, %v74
    %v76 = vadd.f32 %v72, %v75
    %vm77 = vweird.f32 %v56
    %vm78 = vweird.f32 %v72
    %vm79 = vmor %vm77, %vm78
    %v80 = vsel %vm79, %v72, %v76
    %v81 = vand.u32 2147483647, %v56
    %vm82 = vcmp.eq.f32.partialorder %v81, 8.507059e+37
    %v83 = vand.u32 %v56, 2147483648
    %v84 = vor.u32 1.1754944e-38, %v83
    %v85 = vsel %vm82, %v84, %v80
    %v86 = vmul.f32 1.0, %v85
    %vm87 = vcmp.eq.f32.partialorder %v30, %v42
    %vm88 = vcmp.eq.f32.partialorder %v31, %v48
    %vm89 = vmand %vm34, %vm87
    %vm90 = vmand %vm34, %vm88
    %v91 = vsel %vm89, %v33, 8
    %v92 = vsel %vm90, %v33, 8
    %v93 = vrot.slane %v91, 4
    %vm94 = vcmp.lt.s32.totalorder %v91, %v93
    %v95 = vsel %vm94, %v91, %v93
    %v96 = vrot.slane %v95, 2
    %vm97 = vcmp.lt.s32.totalorder %v95, %v96
    %v98 = vsel %vm97, %v95, %v96
    %v99 = vrot.slane %v98, 1
    %vm100 = vcmp.lt.s32.totalorder %v98, %v99
    %v101 = vsel %vm100, %v98, %v99
    %v102 = vrot.slane %v92, 4
    %vm103 = vcmp.lt.s32.totalorder %v92, %v102
    %v104 = vsel %vm103, %v92, %v102
    %v105 = vrot.slane %v104, 2
    %vm106 = vcmp.lt.s32.totalorder %v104, %v105
    %v107 = vsel %vm106, %v104, %v105
    %v108 = vrot.slane %v107, 1
    %vm109 = vcmp.lt.s32.totalorder %v107, %v108
    %v110 = vsel %vm109, %v107, %v108
    %vm111 = vcmask 1041409
    %v112 = vsel %vm111, %v110, %v101
    %113 = vst [vmem:[#allocation6] sm:$0x3] %v112
    %s114 = scalar_lea.vmem [#allocation2], 8
    %v115 = vld [vmem:[%s114] sm:$0xf]
    %v116 = vld [vmem:[%s114 + $0x4] sm:$0xf]
    %v117 = vunpack.c.l.bf16 %v115
    %v118 = vunpack.c.l.bf16 %v116
    %vm119 = vcmp.lt.s32.totalorder %v33, 3
    %v120 = vsel %vm119, %v117, -1e+09
    %v121 = vsel %vm119, %v118, -1e+09
    %v122 = vrot.slane %v120, 4
    %v123 = vmax.f32 %v120, %v122
    %v124 = vrot.slane %v123, 2
    %v125 = vmax.f32 %v123, %v124
    %v126 = vrot.slane %v125, 1
    %v127 = vmax.f32 %v125, %v126
    %v128 = vrot.slane %v121, 4
    %v129 = vmax.f32 %v121, %v128
    %v130 = vrot.slane %v129, 2
    %v131 = vmax.f32 %v129, %v130
    %v132 = vrot.slane %v131, 1
    %v133 = vmax.f32 %v131, %v132
    %v134 = vxor.u32 %v127, 2147483648
    %v135 = vxor.u32 %v133, 2147483648
    %v136 = vmul.f32 %v134, 1.442695
    %v137 = vpow.pop %v136
    %v138 = vmul.f32 %v135, 1.442695
    %v139 = vpow.pop %v138
    %v140 = vadd.f32 %v137, 1.0
    %v141 = vadd.f32 %v139, 1.0
    %v142 = vrcp.pop %v140
    %v143 = vmul.f32 %v140, %v142
    %v144 = vsub.f32 1.0, %v143
    %v145 = vmul.f32 %v142, %v144
    %v146 = vadd.f32 %v142, %v145
    %vm147 = vweird.f32 %v140
    %vm148 = vweird.f32 %v142
    %vm149 = vmor %vm147, %vm148
    %v150 = vsel %vm149, %v142, %v146
    %v151 = vand.u32 2147483647, %v140
    %vm152 = vcmp.eq.f32.partialorder %v151, 8.507059e+37
    %v153 = vand.u32 %v140, 2147483648
    %v154 = vor.u32 1.1754944e-38, %v153
    %v155 = vsel %vm152, %v154, %v150
    %v156 = vmul.f32 1.0, %v155
    %v157 = vrcp.pop %v141
    %v158 = vmul.f32 %v141, %v157
    %v159 = vsub.f32 1.0, %v158
    %v160 = vmul.f32 %v157, %v159
    %v161 = vadd.f32 %v157, %v160
    %vm162 = vweird.f32 %v141
    %vm163 = vweird.f32 %v157
    %vm164 = vmor %vm162, %vm163
    %v165 = vsel %vm164, %v157, %v161
    %v166 = vand.u32 2147483647, %v141
    %vm167 = vcmp.eq.f32.partialorder %v166, 8.507059e+37
    %v168 = vand.u32 %v141, 2147483648
    %v169 = vor.u32 1.1754944e-38, %v168
    %v170 = vsel %vm167, %v169, %v165
    %v171 = vmul.f32 1.0, %v170
    %vm172 = vcmp.eq.f32.partialorder %v117, %v127
    %vm173 = vcmp.eq.f32.partialorder %v118, %v133
    %vm174 = vmand %vm119, %vm172
    %vm175 = vmand %vm119, %vm173
    %v176 = vsel %vm174, %v33, 8
    %v177 = vsel %vm175, %v33, 8
    %v178 = vrot.slane %v176, 4
    %vm179 = vcmp.lt.s32.totalorder %v176, %v178
    %v180 = vsel %vm179, %v176, %v178
    %v181 = vrot.slane %v180, 2
    %vm182 = vcmp.lt.s32.totalorder %v180, %v181
    %v183 = vsel %vm182, %v180, %v181
    %v184 = vrot.slane %v183, 1
    %vm185 = vcmp.lt.s32.totalorder %v183, %v184
    %v186 = vsel %vm185, %v183, %v184
    %v187 = vrot.slane %v177, 4
    %vm188 = vcmp.lt.s32.totalorder %v177, %v187
    %v189 = vsel %vm188, %v177, %v187
    %v190 = vrot.slane %v189, 2
    %vm191 = vcmp.lt.s32.totalorder %v189, %v190
    %v192 = vsel %vm191, %v189, %v190
    %v193 = vrot.slane %v192, 1
    %vm194 = vcmp.lt.s32.totalorder %v192, %v193
    %v195 = vsel %vm194, %v192, %v193
    %v196 = vadd.f32 %v71, %v156
    %v197 = vadd.f32 %v86, %v171
    %v198 = vsel %vm111, %v195, %v186
    %s199 = scalar_lea.vmem [#allocation6], 2
    %200 = vst [vmem:[%s199] sm:$0x3] %v198
    %v201 = vmul.f32 %v196, 0.5
    %v202 = vmul.f32 %v197, 0.5
    %v205 = vsel %vm111, %v202, %v201
    %207 = vst [vmem:[#allocation5] sm:$0x3] %v205
    // Predicated region
    $region10: #{tpu_custom_call.1} parent=1 // pred_check
      _
    $region11: #{tpu_custom_call.1} parent=1 // pred_check_branch
      %209 = sbr.rel (0) target = $region13
    $region12: #{tpu_custom_call.1} parent=1 // pred_region
      %211 = vsyncadd [#allocation4], 0
      %s213 = sshll.u32 [#allocation5], 4
      %s214 = int_to_ptr.vmem [resolvable:$true] %s213
      %s215 = sshll.u32 %s1, 4
      %s216 = int_to_ptr.hbm [resolvable:$true] %s215
      %218 = dma.vmem_to_hbm [thread:$0]  %s214, 32, %s216, [#allocation4]
    $region13: #{tpu_custom_call.1} parent=1 // pred_fallthru
      _
    // Predicated region
    $region14: #{tpu_custom_call.1} parent=1 // pred_check
      _
    $region15: #{tpu_custom_call.1} parent=1 // pred_check_branch
      %220 = sbr.rel (0) target = $region17
    $region16: #{tpu_custom_call.1} parent=1 // pred_region
      %222 = vsyncadd [#allocation7], 0
      %s223 = sshll.u32 [#allocation6], 4
      %s224 = int_to_ptr.vmem [resolvable:$true] %s223
      %s225 = sshll.u32 %s2, 4
      %s226 = int_to_ptr.hbm [resolvable:$true] %s225
      %231 = dma.vmem_to_hbm [thread:$0]  %s224, 64, %s226, [#allocation7], 32, 32, 2
    $region17: #{tpu_custom_call.1} parent=1 // pred_fallthru
      _
    // Predicated region
    $region18: #{tpu_custom_call.1} parent=1 // pred_check
      _
    $region19: #{tpu_custom_call.1} parent=1 // pred_check_branch
      %233 = sbr.rel (0) target = $region21
    $region20: #{tpu_custom_call.1} parent=1 // pred_region
      %235 = dma.done [#allocation4], 32
    $region21: #{tpu_custom_call.1} parent=1 // pred_fallthru
      _
    // Predicated region
    $region22: #{tpu_custom_call.1} parent=1 // pred_check
      _
    $region23: #{tpu_custom_call.1} parent=1 // pred_check_branch
      %237 = sbr.rel (0) target = $region25
    $region24: #{tpu_custom_call.1} parent=1 // pred_region
      %239 = dma.done [#allocation7], 64
    $region25: #{tpu_custom_call.1} parent=1 // pred_fallthru
      _
    %240 = vsyncpa [#allocation3], 1
    %241 = vsyncpa [#allocation4], 1
    %242 = vsyncpa [#allocation7], 1

</llo_original>
